<compile_context>
chip_gen: v7x
topology: tpu7x:2x2x1
jax: 0.10.0
libtpu: 0.0.40
codegen_flags: <defaults>
</compile_context>

<pallas_src>
import functools

import jax
import jax.numpy as jnp
from jax.experimental import pallas as pl
from jax.experimental.pallas import tpu as pltpu


def _attention_gate_kernel(g_ref, x_ref, wg_ref, wx_ref, ba_ref, wp_ref,
                           bp_ref, out_ref):
    """One (batch, spatial) tile of the attention gate (channels-first).

    g_ref : (F_g, TM)     gating-signal tile (spatial on lanes)
    x_ref : (F_l, TM)     skip-connection tile
    wg_ref: (F_int, F_g)  folded conv+BN weight for g
    wx_ref: (F_int, F_l)  folded conv+BN weight for x
    ba_ref: (F_int, 1)    folded bias (bg + bx), added once before the ReLU
    wp_ref: (1, F_int)    folded psi projection
    bp_ref: (1, 1)        SMEM scalar psi bias (BN folded in)
    out_ref: (F_l, TM)    x * sigmoid(psi)
    """
    g = g_ref[...].astype(jnp.float32)
    x = x_ref[...].astype(jnp.float32)

    # 1x1 convs == channel matmuls; spatial (lane) axis is the MXU N axis.
    z = jnp.dot(wg_ref[...], g, preferred_element_type=jnp.float32)
    z = z + jnp.dot(wx_ref[...], x, preferred_element_type=jnp.float32)

    # relu(g1 + x1) with the two biases pre-summed into one broadcast add.
    a = jnp.maximum(z + ba_ref[...], 0.0)

    # psi: project to one channel, add scalar folded-BN bias, sigmoid.
    p = jnp.dot(wp_ref[...], a, preferred_element_type=jnp.float32) + bp_ref[0, 0]
    p = jax.nn.sigmoid(p)                      # (1, TM)

    # gate the skip connection (sublane broadcast over the F_l channels).
    out_ref[...] = (x * p).astype(out_ref.dtype)


@functools.partial(jax.jit, static_argnames=("tile_m",))
def attention_gate(g, x, params, tile_m=1024):
    """g: (B, F_g, H, W) NCHW, x: (B, F_l, H, W) NCHW  ->  (B, F_l, H, W)."""
    B, F_g, H, W = g.shape
    Bx, F_l, Hx, Wx_ = x.shape
    assert (B, H, W) == (Bx, Hx, Wx_), "pad branch not implemented (see TODO)"

    wg, bg, wx, bx, wp, bp = params
    F_int = wg.shape[0]

    HW = H * W
    M = B * HW

    # NCHW -> (B, C, H*W): free reshape, spatial stays contiguous / lane-dense.
    g3 = g.reshape(B, F_g, HW)
    x3 = x.reshape(B, F_l, HW)

    # Both biases are added before the ReLU -> fold them into one vector, and
    # keep the psi bias as an SMEM scalar.
    b_a = (bg + bx).reshape(F_int, 1)
    bp2 = bp.reshape(1, 1)

    # Lane-dense spatial tile: full row if it fits, else a multiple of 128.
    tile = HW if HW <= tile_m else tile_m
    assert tile == HW or tile % 128 == 0, "spatial tile must be lane-aligned"

    # Spatial axis iterates fastest -> weight blocks (constant block index)
    # stay resident in VMEM across the inner loop.
    grid = (B, pl.cdiv(HW, tile))

    cost = pl.CostEstimate(
        flops=2 * M * F_int * (F_g + F_l + 1) + 4 * M * F_int + 3 * M * F_l,
        transcendentals=M,                          # sigmoid exp per pixel
        bytes_accessed=4 * M * (F_g + 2 * F_l)      # read g, read x, write out
        + 4 * (F_int * (F_g + F_l + 1 + 1) + 1),
    )

    out3 = pl.pallas_call(
        _attention_gate_kernel,
        out_shape=jax.ShapeDtypeStruct((B, F_l, HW), x.dtype),
        grid_spec=pltpu.PrefetchScalarGridSpec(
            num_scalar_prefetch=0,
            grid=grid,
            in_specs=[
                pl.BlockSpec((pl.Squeezed(), F_g, tile),
                             lambda b, i: (b, 0, i)),                 # g
                pl.BlockSpec((pl.Squeezed(), F_l, tile),
                             lambda b, i: (b, 0, i)),                 # x
                pl.BlockSpec((F_int, F_g), lambda b, i: (0, 0)),       # Wg
                pl.BlockSpec((F_int, F_l), lambda b, i: (0, 0)),       # Wx
                pl.BlockSpec((F_int, 1), lambda b, i: (0, 0)),         # b_a
                pl.BlockSpec((1, F_int), lambda b, i: (0, 0)),         # Wp
                pl.BlockSpec(memory_space=pltpu.MemorySpace.SMEM),     # bp scalar
            ],
            out_specs=pl.BlockSpec((pl.Squeezed(), F_l, tile),
                                   lambda b, i: (b, 0, i)),
        ),
        compiler_params=pltpu.CompilerParams(
            dimension_semantics=("parallel", "parallel")),
        cost_estimate=cost,
    )(g3, x3, wg, wx, b_a, wp, bp2)

    # (B, F_l, H*W) -> NCHW (free reshape).
    return out3.reshape(B, F_l, H, W)


def _fold_bn(w, b, gamma, beta, mean, var, eps=1e-5):
    """Fold eval-mode BatchNorm into a 1x1 conv (w: (Cout, Cin), b: (Cout,))."""
    scale = gamma / jnp.sqrt(var + eps)
    w_f = w * scale[:, None]
    b_f = (b - mean) * scale + beta
    return w_f, b_f


def make_params(key, F_g, F_l, F_int, dtype=jnp.float32):
    """Deterministic synthetic parameters (conv weights/biases + BN stats)."""
    ks = jax.random.split(key, 6)
    # Conv weights stored channels-first for the kernel: (Cout, Cin).
    wg = jax.random.normal(ks[0], (F_int, F_g), dtype) * 0.1
    bg = jax.random.normal(ks[1], (F_int,), dtype) * 0.1
    wx = jax.random.normal(ks[2], (F_int, F_l), dtype) * 0.1
    bx = jax.random.normal(ks[3], (F_int,), dtype) * 0.1
    wp = jax.random.normal(ks[4], (1, F_int), dtype) * 0.1
    bp = jax.random.normal(ks[5], (1,), dtype) * 0.1

    # Deterministic (non-trivial) BN params, eval-mode running stats.
    def bn(c, seed):
        gamma = 1.0 + 0.01 * jnp.arange(c, dtype=dtype)
        beta = 0.01 * jnp.arange(c, dtype=dtype) - 0.02
        mean = 0.05 * jnp.sin(jnp.arange(c, dtype=dtype) + seed)
        var = 1.0 + 0.02 * jnp.arange(c, dtype=dtype)
        return gamma, beta, mean, var

    wg_f, bg_f = _fold_bn(wg, bg, *bn(F_int, 0))
    wx_f, bx_f = _fold_bn(wx, bx, *bn(F_int, 1))
    wp_f, bp_f = _fold_bn(wp, bp, *bn(1, 2))

    return (wg_f, bg_f.reshape(F_int, 1),
            wx_f, bx_f.reshape(F_int, 1),
            wp_f, bp_f.reshape(1, 1))


def _reference(g, x, params):
    """Pure-JAX reference of the same math for a sanity check."""
    wg, bg, wx, bx, wp, bp = params
    B, F_g, H, W = g.shape
    F_l = x.shape[1]
    gf = g.reshape(B, F_g, H * W)
    xf = x.reshape(B, F_l, H * W)
    g1 = jnp.einsum('oi,bim->bom', wg, gf) + bg[None]
    x1 = jnp.einsum('oi,bim->bom', wx, xf) + bx[None]
    a = jnp.maximum(g1 + x1, 0.0)
    p = jax.nn.sigmoid(jnp.einsum('oi,bim->bom', wp, a) + bp[None])
    out = xf * p
    return out.reshape(B, F_l, H, W)


if __name__ == "__main__":
    key = jax.random.PRNGKey(0)
    k_g, k_x, k_p = jax.random.split(key, 3)

    B, F_g, F_l, F_int, H, W = 2, 4, 4, 32, 16, 16
    g = jax.random.normal(k_g, (B, F_g, H, W), jnp.float32)
    x = jax.random.normal(k_x, (B, F_l, H, W), jnp.float32)
    params = make_params(k_p, F_g, F_l, F_int)

    out = attention_gate(g, x, params)
    out = jax.block_until_ready(out)

    ref = _reference(g, x, params)
    assert out.shape == (B, F_l, H, W)
    assert jnp.allclose(out, ref, atol=1e-5, rtol=1e-5)

    print("KERNEL_OK")
</pallas_src>

<mosaic_0001>
module attributes {stable_mosaic.version = 11 : i64} {
  func.func @_attention_gate_kernel(%arg0: i32, %arg1: i32, %arg2: memref<1x4x256xf32, #tpu.memory_space<vmem>>, %arg3: memref<1x4x256xf32, #tpu.memory_space<vmem>>, %arg4: memref<32x4xf32, #tpu.memory_space<vmem>>, %arg5: memref<32x4xf32, #tpu.memory_space<vmem>>, %arg6: memref<32x1xf32, #tpu.memory_space<vmem>>, %arg7: memref<1x32xf32, #tpu.memory_space<vmem>>, %arg8: memref<1x1xf32, #tpu.memory_space<smem>>, %arg9: memref<1x4x256xf32, #tpu.memory_space<vmem>>) attributes {dimension_semantics = [#tpu.dimension_semantics<parallel>, #tpu.dimension_semantics<parallel>], iteration_bounds = array<i64: 2, 1>, scalar_prefetch = 0 : i64, scratch_operands = 0 : i64, tpu.core_type = #tpu.core_type<tc>, window_params = [{transform_indices = @transform_0, window_bounds = array<i64: 1, 4, 256>}, {transform_indices = @transform_1, window_bounds = array<i64: 1, 4, 256>}, {pipeline_mode = #tpu.pipeline_mode<synchronous>, transform_indices = @transform_2, window_bounds = array<i64: 32, 4>}, {pipeline_mode = #tpu.pipeline_mode<synchronous>, transform_indices = @transform_3, window_bounds = array<i64: 32, 4>}, {pipeline_mode = #tpu.pipeline_mode<synchronous>, transform_indices = @transform_4, window_bounds = array<i64: 32, 1>}, {pipeline_mode = #tpu.pipeline_mode<synchronous>, transform_indices = @transform_5, window_bounds = array<i64: 1, 32>}, {transform_indices = @transform_6, window_bounds = array<i64: 1, 1>}, {transform_indices = @transform_7, window_bounds = array<i64: 1, 4, 256>}]} {
    %c0 = arith.constant 0 : index
    %c0_0 = arith.constant 0 : index
    %c0_1 = arith.constant 0 : index
    %0 = vector.load %arg2[%c0, %c0_0, %c0_1] : memref<1x4x256xf32, #tpu.memory_space<vmem>>, vector<1x4x256xf32>
    %1 = vector.shape_cast %0 : vector<1x4x256xf32> to vector<4x256xf32>
    %c0_2 = arith.constant 0 : index
    %c0_3 = arith.constant 0 : index
    %c0_4 = arith.constant 0 : index
    %2 = vector.load %arg3[%c0_2, %c0_3, %c0_4] : memref<1x4x256xf32, #tpu.memory_space<vmem>>, vector<1x4x256xf32>
    %3 = vector.shape_cast %2 : vector<1x4x256xf32> to vector<4x256xf32>
    %c0_5 = arith.constant 0 : index
    %c0_6 = arith.constant 0 : index
    %4 = vector.load %arg4[%c0_5, %c0_6] : memref<32x4xf32, #tpu.memory_space<vmem>>, vector<32x4xf32>
    %cst = arith.constant dense<0.000000e+00> : vector<32x256xf32>
    %5 = tpu.matmul %4, %1, %cst {dimension_numbers = #tpu.dot_dimension_numbers<[1], [0], [0], [1], [0, 0, 1, 1], [], []>} : vector<32x4xf32>, vector<4x256xf32>, vector<32x256xf32> -> vector<32x256xf32>
    %c0_7 = arith.constant 0 : index
    %c0_8 = arith.constant 0 : index
    %6 = vector.load %arg5[%c0_7, %c0_8] : memref<32x4xf32, #tpu.memory_space<vmem>>, vector<32x4xf32>
    %cst_9 = arith.constant dense<0.000000e+00> : vector<32x256xf32>
    %7 = tpu.matmul %6, %3, %cst_9 {dimension_numbers = #tpu.dot_dimension_numbers<[1], [0], [0], [1], [0, 0, 1, 1], [], []>} : vector<32x4xf32>, vector<4x256xf32>, vector<32x256xf32> -> vector<32x256xf32>
    %8 = arith.addf %5, %7 : vector<32x256xf32>
    %c0_10 = arith.constant 0 : index
    %c0_11 = arith.constant 0 : index
    %9 = vector.load %arg6[%c0_10, %c0_11] : memref<32x1xf32, #tpu.memory_space<vmem>>, vector<32x1xf32>
    %10 = vector.broadcast %9 : vector<32x1xf32> to vector<32x256xf32>
    %11 = arith.addf %8, %10 : vector<32x256xf32>
    %cst_12 = arith.constant 0.000000e+00 : f32
    %12 = vector.broadcast %cst_12 : f32 to vector<32x256xf32>
    %13 = arith.maximumf %11, %12 : vector<32x256xf32>
    %c0_13 = arith.constant 0 : index
    %c0_14 = arith.constant 0 : index
    %14 = vector.load %arg7[%c0_13, %c0_14] : memref<1x32xf32, #tpu.memory_space<vmem>>, vector<1x32xf32>
    %cst_15 = arith.constant dense<0.000000e+00> : vector<1x256xf32>
    %15 = tpu.matmul %14, %13, %cst_15 {dimension_numbers = #tpu.dot_dimension_numbers<[1], [0], [0], [1], [0, 0, 1, 1], [], []>} : vector<1x32xf32>, vector<32x256xf32>, vector<1x256xf32> -> vector<1x256xf32>
    %c0_16 = arith.constant 0 : index
    %c0_17 = arith.constant 0 : index
    %16 = memref.load %arg8[%c0_16, %c0_17] : memref<1x1xf32, #tpu.memory_space<smem>>
    %17 = vector.broadcast %16 : f32 to vector<1x256xf32>
    %18 = arith.addf %15, %17 : vector<1x256xf32>
    %19 = arith.negf %18 : vector<1x256xf32>
    %20 = math.exp %19 : vector<1x256xf32>
    %cst_18 = arith.constant 1.000000e+00 : f32
    %21 = vector.broadcast %cst_18 : f32 to vector<1x256xf32>
    %22 = arith.addf %21, %20 : vector<1x256xf32>
    %23 = arith.divf %21, %22 : vector<1x256xf32>
    %24 = vector.broadcast %23 : vector<1x256xf32> to vector<4x256xf32>
    %25 = arith.mulf %3, %24 : vector<4x256xf32>
    %c0_19 = arith.constant 0 : index
    %c0_20 = arith.constant 0 : index
    %c0_21 = arith.constant 0 : index
    %26 = vector.load %arg9[%c0_19, %c0_20, %c0_21] : memref<1x4x256xf32, #tpu.memory_space<vmem>>, vector<1x4x256xf32>
    %27 = vector.shape_cast %26 : vector<1x4x256xf32> to vector<4x256xf32>
    %28 = vector.shape_cast %25 : vector<4x256xf32> to vector<1x4x256xf32>
    tpu.vector_store %arg9[%c0_19, %c0_20, %c0_21], %28 {strides = array<i32>} : memref<1x4x256xf32, #tpu.memory_space<vmem>>, vector<1x4x256xf32>,
    return
  }
  func.func @transform_0(%arg0: i32, %arg1: i32) -> (i32, i32, i32) {
    %c0_i32 = arith.constant 0 : i32
    %c0_i32_0 = arith.constant 0 : i32
    return %arg0, %c0_i32, %arg1 : i32, i32, i32
  }
  func.func @transform_1(%arg0: i32, %arg1: i32) -> (i32, i32, i32) {
    %c0_i32 = arith.constant 0 : i32
    %c0_i32_0 = arith.constant 0 : i32
    return %arg0, %c0_i32, %arg1 : i32, i32, i32
  }
  func.func @transform_2(%arg0: i32, %arg1: i32) -> (i32, i32) {
    %c0_i32 = arith.constant 0 : i32
    %c0_i32_0 = arith.constant 0 : i32
    %c0_i32_1 = arith.constant 0 : i32
    return %c0_i32, %c0_i32_0 : i32, i32
  }
  func.func @transform_3(%arg0: i32, %arg1: i32) -> (i32, i32) {
    %c0_i32 = arith.constant 0 : i32
    %c0_i32_0 = arith.constant 0 : i32
    %c0_i32_1 = arith.constant 0 : i32
    return %c0_i32, %c0_i32_0 : i32, i32
  }
  func.func @transform_4(%arg0: i32, %arg1: i32) -> (i32, i32) {
    %c0_i32 = arith.constant 0 : i32
    %c0_i32_0 = arith.constant 0 : i32
    %c0_i32_1 = arith.constant 0 : i32
    return %c0_i32, %c0_i32_0 : i32, i32
  }
  func.func @transform_5(%arg0: i32, %arg1: i32) -> (i32, i32) {
    %c0_i32 = arith.constant 0 : i32
    %c0_i32_0 = arith.constant 0 : i32
    %c0_i32_1 = arith.constant 0 : i32
    return %c0_i32, %c0_i32_0 : i32, i32
  }
  func.func @transform_6(%arg0: i32, %arg1: i32) -> (i32, i32) {
    %c0_i32 = arith.constant 0 : i32
    %c0_i32_0 = arith.constant 0 : i32
    %c0_i32_1 = arith.constant 0 : i32
    return %c0_i32, %c0_i32_0 : i32, i32
  }
  func.func @transform_7(%arg0: i32, %arg1: i32) -> (i32, i32, i32) {
    %c0_i32 = arith.constant 0 : i32
    %c0_i32_0 = arith.constant 0 : i32
    return %arg0, %c0_i32, %arg1 : i32, i32, i32
  }
}

</mosaic_0001>

<llo_original>
// kernel: attention_gate.1
$region0: #{attention_gate.1}
  #allocation0 [shape = 'u32[]', space=smem, size = 0x4, offset = 0x4, fixed_abs, tag = 'smem constant byte address 0x4 - core index']
  #allocation1 [shape = 'u32[144,128]{1,0:T(1,128)}', space=vmem, size = 0x12000, scoped, tag = 'internal scratch']
  #allocation2 [shape = 'f32[1,1]{1,0:T(1,128)S(6)}', space=smem, size = 0x200, scoped, tag = 'scoped memory for attention_gate.1']
  %s0 = inlined_call_operand.vmem [shape: f32[2,4,256], index: 0, kind: input, shape index: {}]
  %s1 = inlined_call_operand.vmem [shape: f32[2,4,256], index: 1, kind: input, shape index: {}]
  %s2 = inlined_call_operand.vmem [shape: f32[32,4], index: 2, kind: input, shape index: {}]
  %s3 = inlined_call_operand.vmem [shape: f32[32,4], index: 3, kind: input, shape index: {}]
  %s4 = inlined_call_operand.vmem [shape: f32[32,1], index: 4, kind: input, shape index: {}]
  %s5 = inlined_call_operand.vmem [shape: f32[1,32], index: 5, kind: input, shape index: {}]
  %s6 = inlined_call_operand.<no memory space> [shape: f32[1,1], index: 6, kind: input, shape index: {}]
  %s7 = inlined_call_operand.vmem [shape: f32[2,4,256], index: 7, kind: output, shape index: {}]
  %s8 = sld [smem:[#allocation0]]
  $region61: #{attention_gate.1} parent=0
    _
  %s10 = ssub.s32 1, %s8
  %s11 = scalar_select 0, %s10, %s8
  %12 = sst [smem:[#allocation2]] %s6
  loop: start=0, step=1, limit=4
  $region2: #{attention_gate.1} parent=0 // loop_pre_header
    _
  $region3: #{attention_gate.1} parent=0 // loop_header
    %s14 = sphi 0, %s18
    %p15 = scmp.ge.s32.totalorder %s14, 4
    %s21 = sphi 0, %s33
    %s22 = sphi 0, %s29
    %s23 = sphi 0, %s21
    %s24 = sphi 0, %s22
    %s25 = sphi 0, %s23
    %s26 = sphi 0, %s24
    %s38 = sphi 0, %s40
    %s41 = sphi 0, %s38
    %s42 = sphi 0, %s41
    %s58 = sphi 0, %s42
    %s66 = sphi 0, %s68
    %s69 = sphi 0, %s66
    %s70 = sphi 0, %s69
    %s86 = sphi 0, %s70
    %s90 = sphi 0, %s90
    %s92 = sphi 0, %s90
    %s93 = sphi 0, %s92
    %s107 = sphi 0, %s93
    %s111 = sphi 0, %s111
    %s113 = sphi 0, %s111
    %s114 = sphi 0, %s113
    %s128 = sphi 0, %s114
    %s132 = sphi 0, %s132
    %s134 = sphi 0, %s132
    %s135 = sphi 0, %s134
    %s149 = sphi 0, %s135
    %s153 = sphi 0, %s153
    %s155 = sphi 0, %s153
    %s156 = sphi 0, %s155
    %s170 = sphi 0, %s156
    %s174 = sphi 0, %s174
    %s176 = sphi 0, %s174
    %s177 = sphi 0, %s176
    %s191 = sphi 0, %s177
    %s199 = sphi 0, %s201
    %s202 = sphi 0, %s199
    %s203 = sphi 0, %s202
    %s219 = sphi 0, %s203
  $region4: #{attention_gate.1} parent=0 // loop_header_branch
    %17 = sbr.rel (%p15) target = $region8
  $region5: #{attention_gate.1} parent=0 // loop_body
    %s19 = ssub.s32 %s14, 1
    %s20 = ssub.s32 %s14, 2
    %s27 = sadd.s32 1, %s22
    %p28 = scmp.ge.s32.totalorder %s27, 1
    %s29 = scalar_select %p28, 0, %s27
    %s30 = sadd.s32 1, %s21
    %s31 = scalar_select %p28, %s30, %s21
    %p32 = scmp.ge.s32.totalorder %s31, 2
    %s33 = scalar_select %p32, 0, %s31
    %s34 = ssub.s32 %s21, %s33
    %s35 = ssub.s32 %s22, %s29
    %s36 = sor.u32 %s34, %s35
    %p37 = scmp.eq.s32.totalorder %s36, 0
    %s39 = sadd.s32 %s38, 1
    %s40 = scalar_select %p37, %s38, %s39
    %p43 = pneg %p37
    %p44 = scmp.eq.s32.totalorder %s14, 1
    %p45 = por %p43, %p44
    %p46 = scmp.ne.s32.totalorder %s38, %s41
    %p47 = scmp.eq.s32.totalorder %s14, 0
    %p48 = por %p46, %p47
    %p49 = scmp.ne.s32.totalorder %s38, %s41
    %p50 = scmp.eq.s32.totalorder %s19, 1
    %p51 = por %p49, %p50
    %p52 = scmp.ne.s32.totalorder %s41, %s42
    %p53 = scmp.eq.s32.totalorder %s19, 0
    %p54 = por %p52, %p53
    %p55 = scmp.ne.s32.totalorder %s41, %s42
    %p56 = scmp.eq.s32.totalorder %s20, 1
    %p57 = por %p55, %p56
    %p59 = scmp.ne.s32.totalorder %s42, %s58
    %p60 = scmp.eq.s32.totalorder %s20, 0
    %p61 = por %p59, %p60
    %s62 = ssub.s32 %s21, %s33
    %s63 = ssub.s32 %s22, %s29
    %s64 = sor.u32 %s62, %s63
    %p65 = scmp.eq.s32.totalorder %s64, 0
    %s67 = sadd.s32 %s66, 1
    %s68 = scalar_select %p65, %s66, %s67
    %p71 = pneg %p65
    %p72 = scmp.eq.s32.totalorder %s14, 1
    %p73 = por %p71, %p72
    %p74 = scmp.ne.s32.totalorder %s66, %s69
    %p75 = scmp.eq.s32.totalorder %s14, 0
    %p76 = por %p74, %p75
    %p77 = scmp.ne.s32.totalorder %s66, %s69
    %p78 = scmp.eq.s32.totalorder %s19, 1
    %p79 = por %p77, %p78
    %p80 = scmp.ne.s32.totalorder %s69, %s70
    %p81 = scmp.eq.s32.totalorder %s19, 0
    %p82 = por %p80, %p81
    %p83 = scmp.ne.s32.totalorder %s69, %s70
    %p84 = scmp.eq.s32.totalorder %s20, 1
    %p85 = por %p83, %p84
    %p87 = scmp.ne.s32.totalorder %s70, %s86
    %p88 = scmp.eq.s32.totalorder %s20, 0
    %p89 = por %p87, %p88
    %s91 = sadd.s32 %s90, 1
    %p94 = scmp.eq.s32.totalorder %s14, 1
    %p95 = scmp.ne.s32.totalorder %s90, %s92
    %p96 = scmp.eq.s32.totalorder %s14, 0
    %p97 = por %p95, %p96
    %p98 = scmp.ne.s32.totalorder %s90, %s92
    %p99 = scmp.eq.s32.totalorder %s19, 1
    %p100 = por %p98, %p99
    %p101 = scmp.ne.s32.totalorder %s92, %s93
    %p102 = scmp.eq.s32.totalorder %s19, 0
    %p103 = por %p101, %p102
    %p104 = scmp.ne.s32.totalorder %s92, %s93
    %p105 = scmp.eq.s32.totalorder %s20, 1
    %p106 = por %p104, %p105
    %p108 = scmp.ne.s32.totalorder %s93, %s107
    %p109 = scmp.eq.s32.totalorder %s20, 0
    %p110 = por %p108, %p109
    %s112 = sadd.s32 %s111, 1
    %p115 = scmp.eq.s32.totalorder %s14, 1
    %p116 = scmp.ne.s32.totalorder %s111, %s113
    %p117 = scmp.eq.s32.totalorder %s14, 0
    %p118 = por %p116, %p117
    %p119 = scmp.ne.s32.totalorder %s111, %s113
    %p120 = scmp.eq.s32.totalorder %s19, 1
    %p121 = por %p119, %p120
    %p122 = scmp.ne.s32.totalorder %s113, %s114
    %p123 = scmp.eq.s32.totalorder %s19, 0
    %p124 = por %p122, %p123
    %p125 = scmp.ne.s32.totalorder %s113, %s114
    %p126 = scmp.eq.s32.totalorder %s20, 1
    %p127 = por %p125, %p126
    %p129 = scmp.ne.s32.totalorder %s114, %s128
    %p130 = scmp.eq.s32.totalorder %s20, 0
    %p131 = por %p129, %p130
    %s133 = sadd.s32 %s132, 1
    %p136 = scmp.eq.s32.totalorder %s14, 1
    %p137 = scmp.ne.s32.totalorder %s132, %s134
    %p138 = scmp.eq.s32.totalorder %s14, 0
    %p139 = por %p137, %p138
    %p140 = scmp.ne.s32.totalorder %s132, %s134
    %p141 = scmp.eq.s32.totalorder %s19, 1
    %p142 = por %p140, %p141
    %p143 = scmp.ne.s32.totalorder %s134, %s135
    %p144 = scmp.eq.s32.totalorder %s19, 0
    %p145 = por %p143, %p144
    %p146 = scmp.ne.s32.totalorder %s134, %s135
    %p147 = scmp.eq.s32.totalorder %s20, 1
    %p148 = por %p146, %p147
    %p150 = scmp.ne.s32.totalorder %s135, %s149
    %p151 = scmp.eq.s32.totalorder %s20, 0
    %p152 = por %p150, %p151
    %s154 = sadd.s32 %s153, 1
    %p157 = scmp.eq.s32.totalorder %s14, 1
    %p158 = scmp.ne.s32.totalorder %s153, %s155
    %p159 = scmp.eq.s32.totalorder %s14, 0
    %p160 = por %p158, %p159
    %p161 = scmp.ne.s32.totalorder %s153, %s155
    %p162 = scmp.eq.s32.totalorder %s19, 1
    %p163 = por %p161, %p162
    %p164 = scmp.ne.s32.totalorder %s155, %s156
    %p165 = scmp.eq.s32.totalorder %s19, 0
    %p166 = por %p164, %p165
    %p167 = scmp.ne.s32.totalorder %s155, %s156
    %p168 = scmp.eq.s32.totalorder %s20, 1
    %p169 = por %p167, %p168
    %p171 = scmp.ne.s32.totalorder %s156, %s170
    %p172 = scmp.eq.s32.totalorder %s20, 0
    %p173 = por %p171, %p172
    %s175 = sadd.s32 %s174, 1
    %p178 = scmp.eq.s32.totalorder %s14, 1
    %p179 = scmp.ne.s32.totalorder %s174, %s176
    %p180 = scmp.eq.s32.totalorder %s14, 0
    %p181 = por %p179, %p180
    %p182 = scmp.ne.s32.totalorder %s174, %s176
    %p183 = scmp.eq.s32.totalorder %s19, 1
    %p184 = por %p182, %p183
    %p185 = scmp.ne.s32.totalorder %s176, %s177
    %p186 = scmp.eq.s32.totalorder %s19, 0
    %p187 = por %p185, %p186
    %p188 = scmp.ne.s32.totalorder %s176, %s177
    %p189 = scmp.eq.s32.totalorder %s20, 1
    %p190 = por %p188, %p189
    %p192 = scmp.ne.s32.totalorder %s177, %s191
    %p193 = scmp.eq.s32.totalorder %s20, 0
    %p194 = por %p192, %p193
    %s195 = ssub.s32 %s21, %s33
    %s196 = ssub.s32 %s22, %s29
    %s197 = sor.u32 %s195, %s196
    %p198 = scmp.eq.s32.totalorder %s197, 0
    %s200 = sadd.s32 %s199, 1
    %s201 = scalar_select %p198, %s199, %s200
    %p204 = pneg %p198
    %p205 = scmp.eq.s32.totalorder %s14, 1
    %p206 = por %p204, %p205
    %p207 = scmp.ne.s32.totalorder %s199, %s202
    %p208 = scmp.eq.s32.totalorder %s14, 0
    %p209 = por %p207, %p208
    %p210 = scmp.ne.s32.totalorder %s199, %s202
    %p211 = scmp.eq.s32.totalorder %s19, 1
    %p212 = por %p210, %p211
    %p213 = scmp.ne.s32.totalorder %s202, %s203
    %p214 = scmp.eq.s32.totalorder %s19, 0
    %p215 = por %p213, %p214
    %p216 = scmp.ne.s32.totalorder %s202, %s203
    %p217 = scmp.eq.s32.totalorder %s20, 1
    %p218 = por %p216, %p217
    %p220 = scmp.ne.s32.totalorder %s203, %s219
    %p221 = scmp.eq.s32.totalorder %s20, 0
    %p222 = por %p220, %p221
    %p223 = scmp.le.s32.totalorder 1, %s14
    %p224 = scmp.lt.s32.totalorder %s14, 3
    %p225 = pnand %p223, %p224
    %p226 = pneg %p225
    // Predicated region
    $region9: #{attention_gate.1} parent=5 // pred_check
      _
    $region10: #{attention_gate.1} parent=5 // pred_check_branch
      %228 = sbr.rel (%p225) target = $region12
    $region11: #{attention_gate.1} parent=5 // pred_region
      %s229 = ssub.s32 %s14, 1
      // Predicated region
      $region13: #{attention_gate.1} parent=11 // pred_check
        %p230 = pneg %p103
      $region14: #{attention_gate.1} parent=11 // pred_check_branch
        %232 = sbr.rel (%p230) target = $region16
      $region15: #{attention_gate.1} parent=11 // pred_region
        _
      $region16: #{attention_gate.1} parent=11 // pred_fallthru
        _
      // Predicated region
      $region17: #{attention_gate.1} parent=11 // pred_check
        %p233 = pneg %p124
      $region18: #{attention_gate.1} parent=11 // pred_check_branch
        %235 = sbr.rel (%p233) target = $region20
      $region19: #{attention_gate.1} parent=11 // pred_region
        _
      $region20: #{attention_gate.1} parent=11 // pred_fallthru
        _
      // Predicated region
      $region21: #{attention_gate.1} parent=11 // pred_check
        %p236 = pneg %p145
      $region22: #{attention_gate.1} parent=11 // pred_check_branch
        %238 = sbr.rel (%p236) target = $region24
      $region23: #{attention_gate.1} parent=11 // pred_region
        _
      $region24: #{attention_gate.1} parent=11 // pred_fallthru
        _
      // Predicated region
      $region25: #{attention_gate.1} parent=11 // pred_check
        %p239 = pneg %p166
      $region26: #{attention_gate.1} parent=11 // pred_check_branch
        %241 = sbr.rel (%p239) target = $region28
      $region27: #{attention_gate.1} parent=11 // pred_region
        _
      $region28: #{attention_gate.1} parent=11 // pred_fallthru
        _
      // Predicated region
      $region29: #{attention_gate.1} parent=11 // pred_check
        %p242 = pneg %p187
      $region30: #{attention_gate.1} parent=11 // pred_check_branch
        %244 = sbr.rel (%p242) target = $region32
      $region31: #{attention_gate.1} parent=11 // pred_region
        _
      $region32: #{attention_gate.1} parent=11 // pred_fallthru
        _
    $region12: #{attention_gate.1} parent=5 // pred_fallthru
      _
    %p245 = scmp.lt.s32.totalorder %s14, 2
    // Predicated region
    $region33: #{attention_gate.1} parent=5 // pred_check
      %p246 = pneg %p245
    $region34: #{attention_gate.1} parent=5 // pred_check_branch
      %248 = sbr.rel (%p246) target = $region36
    $region35: #{attention_gate.1} parent=5 // pred_region
      // Predicated region
      $region37: #{attention_gate.1} parent=35 // pred_check
        %p249 = pneg %p48
      $region38: #{attention_gate.1} parent=35 // pred_check_branch
        %251 = sbr.rel (%p249) target = $region40
      $region39: #{attention_gate.1} parent=35 // pred_region
        %s252 = smul.u32 2, %s22
        %p253 = scmp.lt.s32.totalorder %s21, 1
        %s254 = scalar_select %p253, %s21, 1
        %p255 = scmp.lt.s32.totalorder %s252, 1
        %s256 = scalar_select %p255, %s252, 1
        %s257 = smul.addr %s254, 2
        %s258 = sadd.s32 %s256, %s257
        %s259 = smul.addr %s258, 4
        %s260 = scalar_lea.vmem %s0, %s259
        %s261 = smul.u32 2, %s22
      $region40: #{attention_gate.1} parent=35 // pred_fallthru
        _
      // Predicated region
      $region41: #{attention_gate.1} parent=35 // pred_check
        %p262 = pneg %p76
      $region42: #{attention_gate.1} parent=35 // pred_check_branch
        %264 = sbr.rel (%p262) target = $region44
      $region43: #{attention_gate.1} parent=35 // pred_region
        %s265 = smul.u32 2, %s22
        %p266 = scmp.lt.s32.totalorder %s21, 1
        %s267 = scalar_select %p266, %s21, 1
        %p268 = scmp.lt.s32.totalorder %s265, 1
        %s269 = scalar_select %p268, %s265, 1
        %s270 = smul.addr %s267, 2
        %s271 = sadd.s32 %s269, %s270
        %s272 = smul.addr %s271, 4
        %s273 = scalar_lea.vmem %s1, %s272
        %s274 = smul.u32 2, %s22
      $region44: #{attention_gate.1} parent=35 // pred_fallthru
        _
    $region36: #{attention_gate.1} parent=5 // pred_fallthru
      _
    %p275 = scmp.le.s32.totalorder 1, %s14
    %p276 = scmp.lt.s32.totalorder %s14, 3
    %p277 = pnand %p275, %p276
    %p278 = pneg %p277
    // Predicated region
    $region45: #{attention_gate.1} parent=5 // pred_check
      _
    $region46: #{attention_gate.1} parent=5 // pred_check_branch
      %280 = sbr.rel (%p277) target = $region48
    $region47: #{attention_gate.1} parent=5 // pred_region
      %s281 = ssub.s32 %s14, 1
      %s282 = smul.u32 2, %s24
      %p283 = scmp.lt.s32.totalorder %s23, 1
      %s284 = scalar_select %p283, %s23, 1
      %p285 = scmp.lt.s32.totalorder %s282, 1
      %s286 = scalar_select %p285, %s282, 1
      %s287 = smul.addr %s284, 2
      %s288 = sadd.s32 %s286, %s287
      %s289 = smul.addr %s288, 4
      %s290 = scalar_lea.vmem %s0, %s289
      %p291 = pneg %p54
      %p292 = pneg %p51
      %s293 = smul.u32 2, %s24
      %p294 = scmp.lt.s32.totalorder %s23, 1
      %s295 = scalar_select %p294, %s23, 1
      %p296 = scmp.lt.s32.totalorder %s293, 1
      %s297 = scalar_select %p296, %s293, 1
      %s298 = smul.addr %s295, 2
      %s299 = sadd.s32 %s297, %s298
      %s300 = smul.addr %s299, 4
      %s301 = scalar_lea.vmem %s1, %s300
      %p302 = pneg %p82
      %p303 = pneg %p79
      %p304 = pneg %p103
      %p305 = pneg %p100
      %p306 = pneg %p124
      %p307 = pneg %p121
      %p308 = pneg %p145
      %p309 = pneg %p142
      %p310 = pneg %p166
      %p311 = pneg %p163
      %p312 = pneg %p187
      %p313 = pneg %p184
      %p314 = pneg %p215
      %p315 = pneg %p212
      %s316 = smul.u32 2, %s24
      %p317 = scmp.lt.s32.totalorder %s23, 1
      %s318 = scalar_select %p317, %s23, 1
      %p319 = scmp.lt.s32.totalorder %s316, 1
      %s320 = scalar_select %p319, %s316, 1
      %s321 = smul.addr %s318, 2
      %s322 = sadd.s32 %s320, %s321
      %s323 = smul.addr %s322, 4
      %s324 = scalar_lea.vmem %s7, %s323
      %s325 = smul.u32 2, %s24
      %p326 = scmp.lt.s32.totalorder %s23, 1
      %s327 = scalar_select %p326, %s23, 1
      %p328 = scmp.lt.s32.totalorder %s325, 1
      %s329 = scalar_select %p328, %s325, 1
      %s330 = smul.addr %s327, 2
      %s331 = sadd.s32 %s329, %s330
      %s332 = smul.addr %s331, 4
      %s333 = scalar_lea.vmem %s0, %s332
      %s334 = smul.u32 2, %s24
      %s335 = smul.u32 2, %s24
      %p336 = scmp.lt.s32.totalorder %s23, 1
      %s337 = scalar_select %p336, %s23, 1
      %p338 = scmp.lt.s32.totalorder %s335, 1
      %s339 = scalar_select %p338, %s335, 1
      %s340 = smul.addr %s337, 2
      %s341 = sadd.s32 %s339, %s340
      %s342 = smul.addr %s341, 4
      %s343 = scalar_lea.vmem %s1, %s342
      %s344 = smul.u32 2, %s24
      %s345 = smul.u32 2, %s24
      %p346 = scmp.lt.s32.totalorder %s23, 1
      %s347 = scalar_select %p346, %s23, 1
      %p348 = scmp.lt.s32.totalorder %s345, 1
      %s349 = scalar_select %p348, %s345, 1
      %s350 = smul.addr %s347, 2
      %s351 = sadd.s32 %s349, %s350
      %s352 = smul.addr %s351, 4
      %s353 = scalar_lea.vmem %s7, %s352
      %s354 = smul.u32 2, %s24
      %v355 = vld [vmem:[%s333] sm:$0xff]
      %v356 = vld [vmem:[%s343] sm:$0xff]
      %v357 = vld [vmem:[%s2] sm:$0xff]
      %v358 = vld [vmem:[%s2 + $0x8] sm:$0xff]
      %v359 = vld [vmem:[%s2 + $0x10] sm:$0xff]
      %v360 = vld [vmem:[%s2 + $0x18] sm:$0xff]
      %v361 = vld [vmem:[%s3] sm:$0xff]
      %v362 = vld [vmem:[%s3 + $0x8] sm:$0xff]
      %v363 = vld [vmem:[%s3 + $0x10] sm:$0xff]
      %v364 = vld [vmem:[%s3 + $0x18] sm:$0xff]
      %v366 = vcombine.high %v356, %v356
      %vm367 = vcmask 31744
      %v369 = vsel %vm367, %v361, 0
      %v372 = vsel %vm367, %v362, 0
      %v375 = vsel %vm367, %v363, 0
      %v378 = vsel %vm367, %v364, 0
      %vm380 = vcmask 1043456
      %v381 = vsel %vm380, %v356, 0
      %v383 = vsel %vm380, %v366, 0
      %385 = vmatprep.subr.mxu0 %v383
      %386 = vmatpush1.msra.mxu0 %v381
      %387 = vmatprep.subr.mxu0 0.0
      %388 = vmatpush1.msra.mxu0 0.0
      %389 = vmatprep.subr.mxu0 0.0
      %390 = vmatpush1.msra.mxu0 0.0
      %391 = vmatprep.subr.mxu0 0.0
      %392 = vmatpush1.msra.mxu0 0.0
      %393 = vmatprep.subr.mxu0 0.0
      %394 = vmatpush1.msra.mxu0 0.0
      %395 = vmatprep.subr.mxu0 0.0
      %396 = vmatpush1.msra.mxu0 0.0
      %397 = vmatprep.subr.mxu0 0.0
      %398 = vmatpush1.msra.mxu0 0.0
      %399 = vmatprep.subr.mxu0 0.0
      %400 = vmatpush1.msra.mxu0 0.0
      %401 = vmatprep.subr.mxu0 0.0
      %402 = vmatpush1.msra.mxu0 0.0
      %403 = vmatprep.subr.mxu0 0.0
      %404 = vmatpush1.msra.mxu0 0.0
      %405 = vmatprep.subr.mxu0 0.0
      %406 = vmatpush1.msra.mxu0 0.0
      %407 = vmatprep.subr.mxu0 0.0
      %408 = vmatpush1.msra.mxu0 0.0
      %409 = vmatprep.subr.mxu0 0.0
      %410 = vmatpush1.msra.mxu0 0.0
      %411 = vmatprep.subr.mxu0 0.0
      %412 = vmatpush1.msra.mxu0 0.0
      %413 = vmatprep.subr.mxu0 0.0
      %414 = vmatpush1.msra.mxu0 0.0
      %415 = vmatprep.subr.mxu0 0.0
      %416 = vmatpush1.msra.mxu0 0.0
      %417 = vmatprep.subr.mxu0 0.0
      %418 = vmatpush1.msra.mxu0 0.0
      %419 = vmatprep.subr.mxu0 0.0
      %420 = vmatpush1.msra.mxu0 0.0
      %421 = vmatprep.subr.mxu0 0.0
      %422 = vmatpush1.msra.mxu0 0.0
      %423 = vmatprep.subr.mxu0 0.0
      %424 = vmatpush1.msra.mxu0 0.0
      %425 = vmatprep.subr.mxu0 0.0
      %426 = vmatpush1.msra.mxu0 0.0
      %427 = vmatprep.subr.mxu0 0.0
      %428 = vmatpush1.msra.mxu0 0.0
      %429 = vmatprep.subr.mxu0 0.0
      %430 = vmatpush1.msra.mxu0 0.0
      %431 = vmatprep.subr.mxu0 0.0
      %432 = vmatpush1.msra.mxu0 0.0
      %433 = vmatprep.subr.mxu0 0.0
      %434 = vmatpush1.msra.mxu0 0.0
      %435 = vmatprep.subr.mxu0 0.0
      %436 = vmatpush1.msra.mxu0 0.0
      %437 = vmatprep.subr.mxu0 0.0
      %438 = vmatpush1.msra.mxu0 0.0
      %439 = vmatprep.subr.mxu0 0.0
      %440 = vmatpush1.msra.mxu0 0.0
      %441 = vmatprep.subr.mxu0 0.0
      %442 = vmatpush1.msra.mxu0 0.0
      %443 = vmatprep.subr.mxu0 0.0
      %444 = vmatpush1.msra.mxu0 0.0
      %445 = vmatprep.subr.mxu0 0.0
      %446 = vmatpush1.msra.mxu0 0.0
      %447 = vmatprep.subr.mxu0 0.0
      %448 = vmatpush1.msra.mxu0 0.0
      %449 = vmatprep.mubr.f32.mxu0 0.0
      %450 = vmatmul.mubr.f32.gmra.mrb[0].mxu0 %v369
      %v451 = vpop.f32.mrb[0].mxu0
      %v452 = vadd.f32 0.0, %v451
      %v453 = vpop.f32.mrb[0].mxu0
      %v454 = vadd.f32 0.0, %v453
      %455 = vmatprep.mubr.f32.mxu0 0.0
      %456 = vmatmul.mubr.f32.gmra.mrb[0].mxu0 %v372
      %v457 = vpop.f32.mrb[0].mxu0
      %v458 = vadd.f32 0.0, %v457
      %v459 = vpop.f32.mrb[0].mxu0
      %v460 = vadd.f32 0.0, %v459
      %461 = vmatprep.mubr.f32.mxu0 0.0
      %462 = vmatmul.mubr.f32.gmra.mrb[0].mxu0 %v375
      %v463 = vpop.f32.mrb[0].mxu0
      %v464 = vadd.f32 0.0, %v463
      %v465 = vpop.f32.mrb[0].mxu0
      %v466 = vadd.f32 0.0, %v465
      %467 = vmatprep.mubr.f32.mxu0 0.0
      %468 = vmatmul.mubr.f32.gmra.mrb[0].mxu0 %v378
      %v469 = vpop.f32.mrb[0].mxu0
      %v470 = vadd.f32 0.0, %v469
      %v471 = vpop.f32.mrb[0].mxu0
      %v472 = vadd.f32 0.0, %v471
      %473 = vdwg.mxu0
      %v475 = vcombine.high %v355, %v355
      %v477 = vsel %vm367, %v357, 0
      %v480 = vsel %vm367, %v358, 0
      %v483 = vsel %vm367, %v359, 0
      %v486 = vsel %vm367, %v360, 0
      %v488 = vsel %vm380, %v355, 0
      %v490 = vsel %vm380, %v475, 0
      %492 = vmatprep.subr.mxu0 %v490
      %493 = vmatpush1.msra.mxu0 %v488
      %494 = vmatprep.subr.mxu0 0.0
      %495 = vmatpush1.msra.mxu0 0.0
      %496 = vmatprep.subr.mxu0 0.0
      %497 = vmatpush1.msra.mxu0 0.0
      %498 = vmatprep.subr.mxu0 0.0
      %499 = vmatpush1.msra.mxu0 0.0
      %500 = vmatprep.subr.mxu0 0.0
      %501 = vmatpush1.msra.mxu0 0.0
      %502 = vmatprep.subr.mxu0 0.0
      %503 = vmatpush1.msra.mxu0 0.0
      %504 = vmatprep.subr.mxu0 0.0
      %505 = vmatpush1.msra.mxu0 0.0
      %506 = vmatprep.subr.mxu0 0.0
      %507 = vmatpush1.msra.mxu0 0.0
      %508 = vmatprep.subr.mxu0 0.0
      %509 = vmatpush1.msra.mxu0 0.0
      %510 = vmatprep.subr.mxu0 0.0
      %511 = vmatpush1.msra.mxu0 0.0
      %512 = vmatprep.subr.mxu0 0.0
      %513 = vmatpush1.msra.mxu0 0.0
      %514 = vmatprep.subr.mxu0 0.0
      %515 = vmatpush1.msra.mxu0 0.0
      %516 = vmatprep.subr.mxu0 0.0
      %517 = vmatpush1.msra.mxu0 0.0
      %518 = vmatprep.subr.mxu0 0.0
      %519 = vmatpush1.msra.mxu0 0.0
      %520 = vmatprep.subr.mxu0 0.0
      %521 = vmatpush1.msra.mxu0 0.0
      %522 = vmatprep.subr.mxu0 0.0
      %523 = vmatpush1.msra.mxu0 0.0
      %524 = vmatprep.subr.mxu0 0.0
      %525 = vmatpush1.msra.mxu0 0.0
      %526 = vmatprep.subr.mxu0 0.0
      %527 = vmatpush1.msra.mxu0 0.0
      %528 = vmatprep.subr.mxu0 0.0
      %529 = vmatpush1.msra.mxu0 0.0
      %530 = vmatprep.subr.mxu0 0.0
      %531 = vmatpush1.msra.mxu0 0.0
      %532 = vmatprep.subr.mxu0 0.0
      %533 = vmatpush1.msra.mxu0 0.0
      %534 = vmatprep.subr.mxu0 0.0
      %535 = vmatpush1.msra.mxu0 0.0
      %536 = vmatprep.subr.mxu0 0.0
      %537 = vmatpush1.msra.mxu0 0.0
      %538 = vmatprep.subr.mxu0 0.0
      %539 = vmatpush1.msra.mxu0 0.0
      %540 = vmatprep.subr.mxu0 0.0
      %541 = vmatpush1.msra.mxu0 0.0
      %542 = vmatprep.subr.mxu0 0.0
      %543 = vmatpush1.msra.mxu0 0.0
      %544 = vmatprep.subr.mxu0 0.0
      %545 = vmatpush1.msra.mxu0 0.0
      %546 = vmatprep.subr.mxu0 0.0
      %547 = vmatpush1.msra.mxu0 0.0
      %548 = vmatprep.subr.mxu0 0.0
      %549 = vmatpush1.msra.mxu0 0.0
      %550 = vmatprep.subr.mxu0 0.0
      %551 = vmatpush1.msra.mxu0 0.0
      %552 = vmatprep.subr.mxu0 0.0
      %553 = vmatpush1.msra.mxu0 0.0
      %554 = vmatprep.subr.mxu0 0.0
      %555 = vmatpush1.msra.mxu0 0.0
      %556 = vmatprep.mubr.f32.mxu0 0.0
      %557 = vmatmul.mubr.f32.gmra.mrb[0].mxu0 %v477
      %v558 = vpop.f32.mrb[0].mxu0
      %v559 = vadd.f32 %v452, %v558
      %v560 = vpop.f32.mrb[0].mxu0
      %v561 = vadd.f32 %v454, %v560
      %562 = vmatprep.mubr.f32.mxu0 0.0
      %563 = vmatmul.mubr.f32.gmra.mrb[0].mxu0 %v480
      %v564 = vpop.f32.mrb[0].mxu0
      %v565 = vadd.f32 %v458, %v564
      %v566 = vpop.f32.mrb[0].mxu0
      %v567 = vadd.f32 %v460, %v566
      %568 = vmatprep.mubr.f32.mxu0 0.0
      %569 = vmatmul.mubr.f32.gmra.mrb[0].mxu0 %v483
      %v570 = vpop.f32.mrb[0].mxu0
      %v571 = vadd.f32 %v464, %v570
      %v572 = vpop.f32.mrb[0].mxu0
      %v573 = vadd.f32 %v466, %v572
      %574 = vmatprep.mubr.f32.mxu0 0.0
      %575 = vmatmul.mubr.f32.gmra.mrb[0].mxu0 %v486
      %v576 = vpop.f32.mrb[0].mxu0
      %v577 = vadd.f32 %v470, %v576
      %v578 = vpop.f32.mrb[0].mxu0
      %v579 = vadd.f32 %v472, %v578
      %580 = vdwg.mxu0
      %v581 = vld [vmem:[%s4] sm:$0xff]
      %v582 = vld [vmem:[%s4 + $0x8] sm:$0xff]
      %v583 = vld [vmem:[%s4 + $0x10] sm:$0xff]
      %v584 = vld [vmem:[%s4 + $0x18] sm:$0xff]
      %586 = vset.pattern.permute.xlu0 0
      %587 = vperm.xlu0 %586, %v581
      %v588 = vpop.permute.xlu0 %587
      %591 = vset.pattern.permute.xlu0 0
      %592 = vperm.xlu0 %591, %v582
      %v593 = vpop.permute.xlu0 %592
      %596 = vset.pattern.permute.xlu0 0
      %597 = vperm.xlu0 %596, %v583
      %v598 = vpop.permute.xlu0 %597
      %601 = vset.pattern.permute.xlu0 0
      %602 = vperm.xlu0 %601, %v584
      %v603 = vpop.permute.xlu0 %602
      %v605 = vadd.f32 %v559, %v588
      %v606 = vadd.f32 %v561, %v588
      %v607 = vadd.f32 %v565, %v593
      %v608 = vadd.f32 %v567, %v593
      %v609 = vadd.f32 %v571, %v598
      %v610 = vadd.f32 %v573, %v598
      %v611 = vadd.f32 %v577, %v603
      %v612 = vadd.f32 %v579, %v603
      %v613 = vmax.f32 %v605, 0.0
      %v614 = vmax.f32 %v606, 0.0
      %v615 = vmax.f32 %v607, 0.0
      %v616 = vmax.f32 %v608, 0.0
      %v617 = vmax.f32 %v609, 0.0
      %v618 = vmax.f32 %v610, 0.0
      %v619 = vmax.f32 %v611, 0.0
      %v620 = vmax.f32 %v612, 0.0
      %v621 = vld [vmem:[%s5] sm:$0x1]
      %s622 = sld [smem:[#allocation2]]
      %v623 = vstv %s622
      %vm624 = vcmask 261120
      %v626 = vsel %vm624, %v621, 0
      %628 = vmatprep.subr.mxu0 %v614
      %629 = vmatpush1.msra.mxu0 %v613
      %630 = vmatprep.subr.mxu0 %v616
      %631 = vmatpush1.msra.mxu0 %v615
      %632 = vmatprep.subr.mxu0 %v618
      %633 = vmatpush1.msra.mxu0 %v617
      %634 = vmatprep.subr.mxu0 %v620
      %635 = vmatpush1.msra.mxu0 %v619
      %636 = vmatprep.subr.mxu0 0.0
      %637 = vmatpush1.msra.mxu0 0.0
      %638 = vmatprep.subr.mxu0 0.0
      %639 = vmatpush1.msra.mxu0 0.0
      %640 = vmatprep.subr.mxu0 0.0
      %641 = vmatpush1.msra.mxu0 0.0
      %642 = vmatprep.subr.mxu0 0.0
      %643 = vmatpush1.msra.mxu0 0.0
      %644 = vmatprep.subr.mxu0 0.0
      %645 = vmatpush1.msra.mxu0 0.0
      %646 = vmatprep.subr.mxu0 0.0
      %647 = vmatpush1.msra.mxu0 0.0
      %648 = vmatprep.subr.mxu0 0.0
      %649 = vmatpush1.msra.mxu0 0.0
      %650 = vmatprep.subr.mxu0 0.0
      %651 = vmatpush1.msra.mxu0 0.0
      %652 = vmatprep.subr.mxu0 0.0
      %653 = vmatpush1.msra.mxu0 0.0
      %654 = vmatprep.subr.mxu0 0.0
      %655 = vmatpush1.msra.mxu0 0.0
      %656 = vmatprep.subr.mxu0 0.0
      %657 = vmatpush1.msra.mxu0 0.0
      %658 = vmatprep.subr.mxu0 0.0
      %659 = vmatpush1.msra.mxu0 0.0
      %660 = vmatprep.subr.mxu0 0.0
      %661 = vmatpush1.msra.mxu0 0.0
      %662 = vmatprep.subr.mxu0 0.0
      %663 = vmatpush1.msra.mxu0 0.0
      %664 = vmatprep.subr.mxu0 0.0
      %665 = vmatpush1.msra.mxu0 0.0
      %666 = vmatprep.subr.mxu0 0.0
      %667 = vmatpush1.msra.mxu0 0.0
      %668 = vmatprep.subr.mxu0 0.0
      %669 = vmatpush1.msra.mxu0 0.0
      %670 = vmatprep.subr.mxu0 0.0
      %671 = vmatpush1.msra.mxu0 0.0
      %672 = vmatprep.subr.mxu0 0.0
      %673 = vmatpush1.msra.mxu0 0.0
      %674 = vmatprep.subr.mxu0 0.0
      %675 = vmatpush1.msra.mxu0 0.0
      %676 = vmatprep.subr.mxu0 0.0
      %677 = vmatpush1.msra.mxu0 0.0
      %678 = vmatprep.subr.mxu0 0.0
      %679 = vmatpush1.msra.mxu0 0.0
      %680 = vmatprep.subr.mxu0 0.0
      %681 = vmatpush1.msra.mxu0 0.0
      %682 = vmatprep.subr.mxu0 0.0
      %683 = vmatpush1.msra.mxu0 0.0
      %684 = vmatprep.subr.mxu0 0.0
      %685 = vmatpush1.msra.mxu0 0.0
      %686 = vmatprep.subr.mxu0 0.0
      %687 = vmatpush1.msra.mxu0 0.0
      %688 = vmatprep.subr.mxu0 0.0
      %689 = vmatpush1.msra.mxu0 0.0
      %690 = vmatprep.subr.mxu0 0.0
      %691 = vmatpush1.msra.mxu0 0.0
      %692 = vmatprep.mubr.f32.mxu0 0.0
      %693 = vmatmul.mubr.f32.gmra.mrb[0].mxu0 %v626
      %v694 = vpop.f32.mrb[0].mxu0
      %v695 = vadd.f32 %v623, %v694
      %v696 = vpop.f32.mrb[0].mxu0
      %v697 = vadd.f32 %v623, %v696
      %698 = vdwg.mxu0
      %v699 = vxor.u32 %v695, 2147483648
      %v700 = vxor.u32 %v697, 2147483648
      %v701 = vmul.f32 %v699, 1.442695
      %v702 = vpow.pop %v701
      %v703 = vmul.f32 %v700, 1.442695
      %v704 = vpow.pop %v703
      %v705 = vadd.f32 %v702, 1.0
      %v706 = vadd.f32 %v704, 1.0
      %v707 = vrcp.pop %v705
      %v708 = vmul.f32 1.0, %v707
      %v709 = vrcp.pop %v706
      %v710 = vmul.f32 1.0, %v709
      %v711 = vlaneseq
      %v712 = vshrl.u32 %v711, 7
      %v713 = vsub.s32 0, %v712
      %v714 = vrot.slane %v708, %v713
      %v715 = vlaneseq
      %v716 = vshrl.u32 %v715, 7
      %v717 = vsub.s32 0, %v716
      %v718 = vrot.slane %v710, %v717
      %v721 = vcombine.low %v714, %v718
      %v723 = vmul.f32 %v356, %v721
      %724 = vst [vmem:[%s353] sm:$0xff] %v723
      %s725 = smul.u32 2, %s24
      %p726 = scmp.lt.s32.totalorder %s23, 1
      %s727 = scalar_select %p726, %s23, 1
      %p728 = scmp.lt.s32.totalorder %s725, 1
      %s729 = scalar_select %p728, %s725, 1
      %s730 = smul.addr %s727, 2
      %s731 = sadd.s32 %s729, %s730
      %s732 = smul.addr %s731, 4
      %s733 = scalar_lea.vmem %s7, %s732
      // Predicated region
      $region49: #{attention_gate.1} parent=47 // pred_check
        %p734 = pneg %p212
      $region50: #{attention_gate.1} parent=47 // pred_check_branch
        %736 = sbr.rel (%p734) target = $region52
      $region51: #{attention_gate.1} parent=47 // pred_region
        %s737 = smul.u32 2, %s24
      $region52: #{attention_gate.1} parent=47 // pred_fallthru
        _
    $region48: #{attention_gate.1} parent=5 // pred_fallthru
      _
    %p738 = scmp.le.s32.totalorder 2, %s14
    // Predicated region
    $region53: #{attention_gate.1} parent=5 // pred_check
      %p739 = pneg %p738
    $region54: #{attention_gate.1} parent=5 // pred_check_branch
      %741 = sbr.rel (%p739) target = $region56
    $region55: #{attention_gate.1} parent=5 // pred_region
      %s742 = ssub.s32 %s14, 2
      // Predicated region
      $region57: #{attention_gate.1} parent=55 // pred_check
        %p743 = pneg %p218
      $region58: #{attention_gate.1} parent=55 // pred_check_branch
        %745 = sbr.rel (%p743) target = $region60
      $region59: #{attention_gate.1} parent=55 // pred_region
        %s746 = smul.u32 2, %s26
        %p747 = scmp.lt.s32.totalorder %s25, 1
        %s748 = scalar_select %p747, %s25, 1
        %p749 = scmp.lt.s32.totalorder %s746, 1
        %s750 = scalar_select %p749, %s746, 1
        %s751 = smul.addr %s748, 2
        %s752 = sadd.s32 %s750, %s751
        %s753 = smul.addr %s752, 4
        %s754 = scalar_lea.vmem %s7, %s753
      $region60: #{attention_gate.1} parent=55 // pred_fallthru
        _
    $region56: #{attention_gate.1} parent=5 // pred_fallthru
      _
  $region6: #{attention_gate.1} parent=0 // loop_footer
    %s18 = sadd.s32 1, %s14
  $region7: #{attention_gate.1} parent=0 // loop_footer_branch
    %13 = sbr.rel target = $region3
  $region8: #{attention_gate.1} parent=0 // loop_exit
    _

</llo_original>
